<compile_context>
chip_gen: v6e
topology: v6e:2x2x1
jax: 0.10.0
libtpu: 0.0.40
codegen_flags: <defaults>
</compile_context>

<pallas_src>
import functools
import math

import jax
import jax.numpy as jnp
from jax.experimental import pallas as pl
from jax.experimental.pallas import tpu as pltpu


_VMEM_LIMIT = 64 * 1024 * 1024   # explicit budget: fits v7x's 64 MiB physical VMEM
_NEG_BIG = -1e30                 # finite "-inf" so padded lanes give exp(.) == 0


def _round_up(x, m):
    return ((x + m - 1) // m) * m


# ---------------------------------------------------------------------------
# Pallas kernel 1: per-pixel linear projection (1x1-conv surrogate), VPU path
# ---------------------------------------------------------------------------

def _proj_kernel(x_ref, w_ref, b_ref, o_ref, *, cin, cout):
    # x: (Cin, TM) f32, pixels on the lane axis
    # w: (Cin, Cout) f32 in SMEM ; b: (Cout,) f32 in SMEM
    # o: (Cout, TM) f32 -- lane-dense output (no masked stores)
    # Cin/Cout are tiny (<=6), so this is a streaming bandwidth kernel: plain
    # VPU broadcast-multiply-accumulate, no MXU involvement.
    x = x_ref[...]
    rows = []
    for co in range(cout):
        acc = x[0:1, :] * w_ref[0, co]
        for ci in range(1, cin):
            acc = acc + x[ci:ci + 1, :] * w_ref[ci, co]
        rows.append(acc + b_ref[co])
    o_ref[...] = jnp.concatenate(rows, axis=0)


def pointwise_proj(x_t, w, b, *, tile_m=2048):
    """out(Cout, M) = w.T @ x_t + b, tiled over lane-major pixel tiles."""
    cin, m = x_t.shape
    cout = w.shape[1]
    tm = min(tile_m, _round_up(m, 128))
    m_pad = _round_up(m, tm)
    x_p = jnp.pad(x_t.astype(jnp.float32), ((0, 0), (0, m_pad - m)))
    out = pl.pallas_call(
        functools.partial(_proj_kernel, cin=cin, cout=cout),
        out_shape=jax.ShapeDtypeStruct((cout, m_pad), jnp.float32),
        grid=(m_pad // tm,),
        in_specs=[
            pl.BlockSpec((cin, tm), lambda i: (0, i)),
            pl.BlockSpec(memory_space=pltpu.MemorySpace.SMEM),
            pl.BlockSpec(memory_space=pltpu.MemorySpace.SMEM),
        ],
        out_specs=pl.BlockSpec((cout, tm), lambda i: (0, i)),
        compiler_params=pltpu.CompilerParams(
            dimension_semantics=("parallel",),
            vmem_limit_bytes=_VMEM_LIMIT),
    )(x_p, w.astype(jnp.float32), b.astype(jnp.float32))
    return out[:, :m]


# ---------------------------------------------------------------------------
# Pallas kernel 2: cross-correlation as per-row-tile MXU matmuls
# ---------------------------------------------------------------------------

def _corr_kernel(rp_ref, w_ref, o_ref, acc_ref, *, kh_steps, shift_stride, m_tile):
    # rp : ((tr+KH)*Wo_pad, KW*C) bf16  KW-im2col rows for this tile (+KH halo)
    # w  : (KH, KW*C, R_pad)      bf16  VMEM-resident crop weights (DMA'd once)
    # o/acc: (tr*Wo_pad, R_pad)   f32
    acc_ref[...] = jnp.zeros_like(acc_ref)

    def body(kh, carry):
        # Row shift kh == a sublane-aligned offset on the flattened (row, ox) axis.
        start = pl.multiple_of(kh * shift_stride, 8)
        x = rp_ref[pl.ds(start, m_tile), :]
        acc_ref[...] += jnp.dot(x, w_ref[kh],
                                preferred_element_type=jnp.float32)
        return carry

    jax.lax.fori_loop(0, kh_steps, body, 0)
    o_ref[...] = acc_ref[...]          # single store per tile (v5e-friendly)


def correlate_conv(logits_hwc, kernels_rkkc, pad, *, tile_rows=32, lane=128):
    """F.conv2d(logits[None], kernels, padding=pad) for batch=1, on the MXU.

    logits_hwc:   (Hp, Wp, C)     key-stream logits
    kernels_rkkc: (R, KH, KW, C)  rotated-crop (query) features
    returns       (Ho, Wo, R) f32 channel-last cross-correlation maps
    """
    Hp, Wp, C = logits_hwc.shape
    R, KH, KW, Ck = kernels_rkkc.shape
    assert C == Ck
    Ho = Hp + 2 * pad - KH + 1
    Wo = Wp + 2 * pad - KW + 1
    KWC = KW * C

    # Row-tile size: keep >=2 tiles whenever possible so the "parallel" grid
    # axis can shard across both v7x TensorCores; raise tile_rows on v5e/v6e
    # (128 MiB VMEM) for slightly less halo duplication.
    ho8 = _round_up(Ho, 8)
    cand = min(tile_rows, ho8 // 2) if ho8 >= 16 else ho8
    tr = max(8, (cand // 8) * 8)
    n_t = -(-Ho // tr)
    ho_pad = n_t * tr

    wo_pad = _round_up(Wo, 8)
    r_pad = _round_up(max(R, 1), lane)
    trk = tr + KH                      # rows per tile incl. KH-row halo

    # Conv zero padding + extra rows/cols so every static tile slice is in range.
    hin_need = ho_pad + KH
    win_need = wo_pad + KW - 1
    after_r = hin_need - Hp - pad
    after_c = win_need - Wp - pad
    x = jnp.pad(logits_hwc,
                ((pad, after_r), (pad, after_c), (0, 0))).astype(jnp.bfloat16)

    # KW-only im2col ("rowpatch"): rowpatch[iy, ox, kw*C + c] = x[iy, ox+kw, c].
    # Built from KW static slices + one concat (no gathers).  Unlike rev 2 there
    # is NO KH-fold duplication in HBM (~KH x less traffic).
    rowpatch = jnp.concatenate(
        [x[:, j:j + wo_pad, :] for j in range(KW)], axis=2)   # (hin, wo_pad, KW*C)

    # Per-row-tile slabs: tile t needs rows [t*tr, t*tr + tr + KH) -> a small
    # (tr+KH)/tr halo duplication, flattened so the kernel's kh shift is a
    # plain sublane-aligned pl.ds offset.
    rp_tiled = jnp.stack(
        [rowpatch[t * tr:t * tr + trk] for t in range(n_t)], axis=0)
    rp_tiled = rp_tiled.reshape(n_t, trk * wo_pad, KWC)

    # Crop weights -> (KH, KW*C, R_pad), lane-dense rotation axis.
    wmat = jnp.transpose(kernels_rkkc, (1, 2, 3, 0)).reshape(KH, KWC, R)
    wmat = jnp.pad(wmat, ((0, 0), (0, 0), (0, r_pad - R))).astype(jnp.bfloat16)

    m_tile = tr * wo_pad
    out = pl.pallas_call(
        functools.partial(_corr_kernel, kh_steps=KH,
                          shift_stride=wo_pad, m_tile=m_tile),
        out_shape=jax.ShapeDtypeStruct((ho_pad * wo_pad, r_pad), jnp.float32),
        grid=(n_t,),
        in_specs=[
            pl.BlockSpec((None, trk * wo_pad, KWC), lambda t: (t, 0, 0)),
            # Constant index map -> weights fetched once, VMEM-resident.
            pl.BlockSpec((KH, KWC, r_pad), lambda t: (0, 0, 0)),
        ],
        out_specs=pl.BlockSpec((m_tile, r_pad), lambda t: (t, 0)),
        scratch_shapes=[pltpu.VMEM((m_tile, r_pad), jnp.float32)],
        compiler_params=pltpu.CompilerParams(
            dimension_semantics=("parallel",),
            vmem_limit_bytes=_VMEM_LIMIT),
    )(rp_tiled, wmat)

    return out.reshape(ho_pad, wo_pad, r_pad)[:Ho, :Wo, :R]


# ---------------------------------------------------------------------------
# Pallas kernel 3: fused single-pass softmax over the flattened score map
# ---------------------------------------------------------------------------

def _softmax_kernel(x_ref, o_ref):
    x = x_ref[...]
    m = jnp.max(jnp.max(x, axis=1, keepdims=True), axis=0, keepdims=True)
    e = jnp.exp(x - m)
    s = jnp.sum(jnp.sum(e, axis=1, keepdims=True), axis=0, keepdims=True)
    o_ref[...] = e * (1.0 / s)     # exact division (torch.softmax parity)


def pallas_softmax_flat(flat, *, lane=128):
    """Single-pass softmax: the whole score map stays VMEM-resident
    (~7.5 MB f32 at full cliport scale), so it is read from HBM exactly once."""
    n = flat.shape[0]
    n_pad = _round_up(max(n, lane * 8), lane * 8)
    x = jnp.pad(flat.astype(jnp.float32), (0, n_pad - n),
                constant_values=_NEG_BIG)
    rows = n_pad // lane
    x2d = x.reshape(rows, lane)
    y2d = pl.pallas_call(
        _softmax_kernel,
        out_shape=jax.ShapeDtypeStruct((rows, lane), jnp.float32),
        grid=(1,),
        in_specs=[pl.BlockSpec((rows, lane), lambda i: (0, 0))],
        out_specs=pl.BlockSpec((rows, lane), lambda i: (0, 0)),
        compiler_params=pltpu.CompilerParams(vmem_limit_bytes=_VMEM_LIMIT),
    )(x2d)
    return y2d.reshape(-1)[:n]


# ---------------------------------------------------------------------------
# JAX glue: rotation about a pivot, slice-based bilinear resize + crop
# ---------------------------------------------------------------------------

def _rotate_about_pivot(img_chw, theta_rad, pivot_yx):
    """Bilinear, inverse-mapped rotation about pivot (row, col), zero fill.
    # TODO(synk): exact kornia warp_affine sign/rounding conventions are not
    # bit-matched; this is a standard bilinear rotation about the pivot."""
    C, H, W = img_chw.shape
    cy = jnp.asarray(pivot_yx[0], jnp.float32)
    cx = jnp.asarray(pivot_yx[1], jnp.float32)
    yy, xx = jnp.meshgrid(jnp.arange(H, dtype=jnp.float32),
                          jnp.arange(W, dtype=jnp.float32), indexing="ij")
    cos_t, sin_t = jnp.cos(theta_rad), jnp.sin(theta_rad)
    dx, dy = xx - cx, yy - cy
    sx = cos_t * dx + sin_t * dy + cx
    sy = -sin_t * dx + cos_t * dy + cy
    x0 = jnp.floor(sx).astype(jnp.int32)
    y0 = jnp.floor(sy).astype(jnp.int32)
    fx = sx - x0.astype(jnp.float32)
    fy = sy - y0.astype(jnp.float32)

    def sample(yi, xi):
        valid = (yi >= 0) & (yi < H) & (xi >= 0) & (xi < W)
        v = img_chw[:, jnp.clip(yi, 0, H - 1), jnp.clip(xi, 0, W - 1)]
        return jnp.where(valid[None, :, :], v, 0.0)

    v00 = sample(y0, x0)
    v01 = sample(y0, x0 + 1)
    v10 = sample(y0 + 1, x0)
    v11 = sample(y0 + 1, x0 + 1)
    top = v00 * (1.0 - fx) + v01 * fx
    bot = v10 * (1.0 - fx) + v11 * fx
    return top * (1.0 - fy) + bot * fy


def _resize_crop_bilinear(corr_hwr, Hp, Wp, pad):
    """F.interpolate(..., (Hp, Wp), mode='bilinear', align_corners=False)
    followed by the [pad:-pad, pad:-pad] crop, done as unit-stride slices plus
    weighted adds (no XLA gathers).  Valid here because Ho == Hp+1, Wo == Wp+1
    (crop_size == 2*pad), so every cropped output pixel blends source pixels
    (y, y+1) x (x, x+1) with weights (2y+1)/(2Hp), (2x+1)/(2Wp)."""
    Ho, Wo, _ = corr_hwr.shape
    assert Ho == Hp + 1 and Wo == Wp + 1
    h = Hp - 2 * pad
    w = Wp - 2 * pad
    fy = (2.0 * jnp.arange(pad, pad + h, dtype=jnp.float32) + 1.0) / (2.0 * Hp)
    fx = (2.0 * jnp.arange(pad, pad + w, dtype=jnp.float32) + 1.0) / (2.0 * Wp)
    win = corr_hwr[pad:pad + h + 1, pad:pad + w + 1, :]
    rows = win[:-1] * (1.0 - fy)[:, None, None] + win[1:] * fy[:, None, None]
    out = (rows[:, :-1] * (1.0 - fx)[None, :, None]
           + rows[:, 1:] * fx[None, :, None])
    return out                                                   # (h, w, R)


# ---------------------------------------------------------------------------
# Transport module
# ---------------------------------------------------------------------------

class TransportPallas:
    """Reproduction of cliport Transport.forward / Transport.correlate."""

    def __init__(self, in_shape, n_rotations, crop_size, key):
        self.n_rotations = n_rotations
        self.crop_size = crop_size
        self.pad_size = crop_size // 2
        self.in_shape = tuple(in_shape)
        self.output_dim = 3
        self.kernel_dim = 3
        self.angles_deg = [i * 2.0 * 180.0 / n_rotations
                           for i in range(n_rotations)]
        c_in = self.in_shape[2]
        k1, k2, k3, k4 = jax.random.split(key, 4)
        # TODO(synk): original builds two ResNet FCN streams from an external
        # model registry; here each stream is a 1x1-conv projection surrogate.
        self.wk = 0.1 * jax.random.normal(k1, (c_in, self.output_dim), jnp.float32)
        self.bk = 0.01 * jax.random.normal(k2, (self.output_dim,), jnp.float32)
        self.wq = 0.1 * jax.random.normal(k3, (c_in, self.kernel_dim), jnp.float32)
        self.bq = 0.01 * jax.random.normal(k4, (self.kernel_dim,), jnp.float32)

    def correlate(self, logits_hwc, kernels_rkkc, softmax):
        pad = self.pad_size
        Hp, Wp = logits_hwc.shape[0], logits_hwc.shape[1]
        corr = correlate_conv(logits_hwc, kernels_rkkc, pad)     # (Ho, Wo, R)
        out_hwr = _resize_crop_bilinear(corr, Hp, Wp, pad)       # (h, w, R)
        h, w, R = out_hwr.shape
        # batch == 1 => channel_num == R and the per-sample stack is identity.
        if softmax:
            flat = pallas_softmax_flat(out_hwr.reshape(-1))
            out_hwr = flat.reshape(h, w, R)
        return jnp.transpose(out_hwr, (2, 0, 1))[None]           # (1, R, h, w)

    def forward(self, inp_img, p, softmax=True):
        pad = self.pad_size
        cs = self.crop_size
        R = self.n_rotations

        img = jnp.pad(jnp.asarray(inp_img, jnp.float32),
                      ((pad, pad), (pad, pad), (0, 0)))          # (Hp, Wp, C)
        Hp, Wp, C = img.shape
        pv = jnp.asarray(p, jnp.int32) + pad
        in_chw = jnp.transpose(img, (2, 0, 1))

        # Rotated crops: rotate only a pivot-centred window (margin covers the
        # rotated cs x cs footprint + bilinear neighbours), vmapped over R.
        hw = int(math.ceil(pad * math.sqrt(2.0))) + 2
        big = jnp.pad(in_chw, ((0, 0), (hw, hw), (hw, hw)))
        window = jax.lax.dynamic_slice(big, (0, pv[0], pv[1]), (C, 2 * hw, 2 * hw))
        angles = jnp.deg2rad(jnp.asarray(self.angles_deg, jnp.float32))
        rot = jax.vmap(
            lambda th: _rotate_about_pivot(window, th, (hw, hw)))(angles)
        crops = rot[:, :, hw - pad:hw + pad, hw - pad:hw + pad]  # (R, C, cs, cs)

        # Key stream (image): pixels on lanes, lane-dense (3, M) output.
        x_img_t = img.reshape(Hp * Wp, C).T                      # (C, Hp*Wp)
        logits_t = pointwise_proj(x_img_t, self.wk, self.bk)     # (3, Hp*Wp)
        logits_hwc = logits_t.T.reshape(Hp, Wp, self.output_dim)

        # Query stream (crops): separate call -- no concat plumbing.
        x_crop_t = crops.reshape(R, C, cs * cs).transpose(1, 0, 2).reshape(C, R * cs * cs)
        kern_t = pointwise_proj(x_crop_t, self.wq, self.bq)      # (3, R*cs*cs)
        kernels = kern_t.reshape(self.kernel_dim, R, cs, cs).transpose(1, 2, 3, 0)

        return self.correlate(logits_hwc, kernels, softmax)


if __name__ == "__main__":
    key = jax.random.PRNGKey(0)
    k_img, k_params = jax.random.split(key)

    H0, W0, C = 16, 16, 4
    crop_size = 8
    n_rotations = 2

    inp_img = jax.random.normal(k_img, (H0, W0, C), jnp.float32)
    p = jnp.array([7, 9], jnp.int32)

    model = TransportPallas(
        in_shape=(H0 + crop_size, W0 + crop_size, C),
        n_rotations=n_rotations,
        crop_size=crop_size,
        key=k_params,
    )

    out = model.forward(inp_img, p, softmax=True)
    out = jax.block_until_ready(out)
    assert out.shape == (1, n_rotations, H0, W0), out.shape
    assert bool(jnp.isfinite(out).all())
    print("KERNEL_OK")
</pallas_src>

<mosaic_0001>
module attributes {stable_mosaic.version = 11 : i64} {
  func.func @_proj_kernel(%arg0: i32, %arg1: memref<4x640xf32, #tpu.memory_space<vmem>>, %arg2: memref<4x3xf32, #tpu.memory_space<smem>>, %arg3: memref<3xf32, #tpu.memory_space<smem>>, %arg4: memref<3x640xf32, #tpu.memory_space<vmem>>) attributes {dimension_semantics = [#tpu.dimension_semantics<parallel>], iteration_bounds = array<i64: 1>, scalar_prefetch = 0 : i64, scratch_operands = 0 : i64, tpu.core_type = #tpu.core_type<tc>, window_params = [{transform_indices = @transform_0, window_bounds = array<i64: 4, 640>}, {transform_indices = @transform_1, window_bounds = array<i64: 4, 3>}, {transform_indices = @transform_2, window_bounds = array<i64: 3>}, {transform_indices = @transform_3, window_bounds = array<i64: 3, 640>}]} {
    %c0 = arith.constant 0 : index
    %c0_0 = arith.constant 0 : index
    %0 = vector.load %arg1[%c0, %c0_0] : memref<4x640xf32, #tpu.memory_space<vmem>>, vector<4x640xf32>
    %1 = vector.extract_strided_slice %0 {offsets = [0, 0], sizes = [1, 640], strides = [1, 1]} : vector<4x640xf32> to vector<1x640xf32>
    %c0_1 = arith.constant 0 : index
    %c0_2 = arith.constant 0 : index
    %2 = memref.load %arg2[%c0_1, %c0_2] : memref<4x3xf32, #tpu.memory_space<smem>>
    %3 = vector.broadcast %2 : f32 to vector<1x640xf32>
    %4 = arith.mulf %1, %3 : vector<1x640xf32>
    %5 = vector.extract_strided_slice %0 {offsets = [1, 0], sizes = [1, 640], strides = [1, 1]} : vector<4x640xf32> to vector<1x640xf32>
    %c1 = arith.constant 1 : index
    %c0_3 = arith.constant 0 : index
    %6 = memref.load %arg2[%c1, %c0_3] : memref<4x3xf32, #tpu.memory_space<smem>>
    %7 = vector.broadcast %6 : f32 to vector<1x640xf32>
    %8 = arith.mulf %5, %7 : vector<1x640xf32>
    %9 = arith.addf %4, %8 : vector<1x640xf32>
    %10 = vector.extract_strided_slice %0 {offsets = [2, 0], sizes = [1, 640], strides = [1, 1]} : vector<4x640xf32> to vector<1x640xf32>
    %c2 = arith.constant 2 : index
    %c0_4 = arith.constant 0 : index
    %11 = memref.load %arg2[%c2, %c0_4] : memref<4x3xf32, #tpu.memory_space<smem>>
    %12 = vector.broadcast %11 : f32 to vector<1x640xf32>
    %13 = arith.mulf %10, %12 : vector<1x640xf32>
    %14 = arith.addf %9, %13 : vector<1x640xf32>
    %15 = vector.extract_strided_slice %0 {offsets = [3, 0], sizes = [1, 640], strides = [1, 1]} : vector<4x640xf32> to vector<1x640xf32>
    %c3 = arith.constant 3 : index
    %c0_5 = arith.constant 0 : index
    %16 = memref.load %arg2[%c3, %c0_5] : memref<4x3xf32, #tpu.memory_space<smem>>
    %17 = vector.broadcast %16 : f32 to vector<1x640xf32>
    %18 = arith.mulf %15, %17 : vector<1x640xf32>
    %19 = arith.addf %14, %18 : vector<1x640xf32>
    %c0_6 = arith.constant 0 : index
    %20 = memref.load %arg3[%c0_6] : memref<3xf32, #tpu.memory_space<smem>>
    %21 = vector.broadcast %20 : f32 to vector<1x640xf32>
    %22 = arith.addf %19, %21 : vector<1x640xf32>
    %23 = vector.extract_strided_slice %0 {offsets = [0, 0], sizes = [1, 640], strides = [1, 1]} : vector<4x640xf32> to vector<1x640xf32>
    %c0_7 = arith.constant 0 : index
    %c1_8 = arith.constant 1 : index
    %24 = memref.load %arg2[%c0_7, %c1_8] : memref<4x3xf32, #tpu.memory_space<smem>>
    %25 = vector.broadcast %24 : f32 to vector<1x640xf32>
    %26 = arith.mulf %23, %25 : vector<1x640xf32>
    %27 = vector.extract_strided_slice %0 {offsets = [1, 0], sizes = [1, 640], strides = [1, 1]} : vector<4x640xf32> to vector<1x640xf32>
    %c1_9 = arith.constant 1 : index
    %c1_10 = arith.constant 1 : index
    %28 = memref.load %arg2[%c1_9, %c1_10] : memref<4x3xf32, #tpu.memory_space<smem>>
    %29 = vector.broadcast %28 : f32 to vector<1x640xf32>
    %30 = arith.mulf %27, %29 : vector<1x640xf32>
    %31 = arith.addf %26, %30 : vector<1x640xf32>
    %32 = vector.extract_strided_slice %0 {offsets = [2, 0], sizes = [1, 640], strides = [1, 1]} : vector<4x640xf32> to vector<1x640xf32>
    %c2_11 = arith.constant 2 : index
    %c1_12 = arith.constant 1 : index
    %33 = memref.load %arg2[%c2_11, %c1_12] : memref<4x3xf32, #tpu.memory_space<smem>>
    %34 = vector.broadcast %33 : f32 to vector<1x640xf32>
    %35 = arith.mulf %32, %34 : vector<1x640xf32>
    %36 = arith.addf %31, %35 : vector<1x640xf32>
    %37 = vector.extract_strided_slice %0 {offsets = [3, 0], sizes = [1, 640], strides = [1, 1]} : vector<4x640xf32> to vector<1x640xf32>
    %c3_13 = arith.constant 3 : index
    %c1_14 = arith.constant 1 : index
    %38 = memref.load %arg2[%c3_13, %c1_14] : memref<4x3xf32, #tpu.memory_space<smem>>
    %39 = vector.broadcast %38 : f32 to vector<1x640xf32>
    %40 = arith.mulf %37, %39 : vector<1x640xf32>
    %41 = arith.addf %36, %40 : vector<1x640xf32>
    %c1_15 = arith.constant 1 : index
    %42 = memref.load %arg3[%c1_15] : memref<3xf32, #tpu.memory_space<smem>>
    %43 = vector.broadcast %42 : f32 to vector<1x640xf32>
    %44 = arith.addf %41, %43 : vector<1x640xf32>
    %45 = vector.extract_strided_slice %0 {offsets = [0, 0], sizes = [1, 640], strides = [1, 1]} : vector<4x640xf32> to vector<1x640xf32>
    %c0_16 = arith.constant 0 : index
    %c2_17 = arith.constant 2 : index
    %46 = memref.load %arg2[%c0_16, %c2_17] : memref<4x3xf32, #tpu.memory_space<smem>>
    %47 = vector.broadcast %46 : f32 to vector<1x640xf32>
    %48 = arith.mulf %45, %47 : vector<1x640xf32>
    %49 = vector.extract_strided_slice %0 {offsets = [1, 0], sizes = [1, 640], strides = [1, 1]} : vector<4x640xf32> to vector<1x640xf32>
    %c1_18 = arith.constant 1 : index
    %c2_19 = arith.constant 2 : index
    %50 = memref.load %arg2[%c1_18, %c2_19] : memref<4x3xf32, #tpu.memory_space<smem>>
    %51 = vector.broadcast %50 : f32 to vector<1x640xf32>
    %52 = arith.mulf %49, %51 : vector<1x640xf32>
    %53 = arith.addf %48, %52 : vector<1x640xf32>
    %54 = vector.extract_strided_slice %0 {offsets = [2, 0], sizes = [1, 640], strides = [1, 1]} : vector<4x640xf32> to vector<1x640xf32>
    %c2_20 = arith.constant 2 : index
    %c2_21 = arith.constant 2 : index
    %55 = memref.load %arg2[%c2_20, %c2_21] : memref<4x3xf32, #tpu.memory_space<smem>>
    %56 = vector.broadcast %55 : f32 to vector<1x640xf32>
    %57 = arith.mulf %54, %56 : vector<1x640xf32>
    %58 = arith.addf %53, %57 : vector<1x640xf32>
    %59 = vector.extract_strided_slice %0 {offsets = [3, 0], sizes = [1, 640], strides = [1, 1]} : vector<4x640xf32> to vector<1x640xf32>
    %c3_22 = arith.constant 3 : index
    %c2_23 = arith.constant 2 : index
    %60 = memref.load %arg2[%c3_22, %c2_23] : memref<4x3xf32, #tpu.memory_space<smem>>
    %61 = vector.broadcast %60 : f32 to vector<1x640xf32>
    %62 = arith.mulf %59, %61 : vector<1x640xf32>
    %63 = arith.addf %58, %62 : vector<1x640xf32>
    %c2_24 = arith.constant 2 : index
    %64 = memref.load %arg3[%c2_24] : memref<3xf32, #tpu.memory_space<smem>>
    %65 = vector.broadcast %64 : f32 to vector<1x640xf32>
    %66 = arith.addf %63, %65 : vector<1x640xf32>
    %67 = tpu.concatenate %22, %44, %66 in 0 : vector<1x640xf32>, vector<1x640xf32>, vector<1x640xf32> -> vector<3x640xf32>
    %c0_25 = arith.constant 0 : index
    %c0_26 = arith.constant 0 : index
    %68 = vector.load %arg4[%c0_25, %c0_26] : memref<3x640xf32, #tpu.memory_space<vmem>>, vector<3x640xf32>
    tpu.vector_store %arg4[%c0_25, %c0_26], %67 {strides = array<i32>} : memref<3x640xf32, #tpu.memory_space<vmem>>, vector<3x640xf32>,
    return
  }
  func.func @transform_0(%arg0: i32) -> (i32, i32) {
    %c0_i32 = arith.constant 0 : i32
    %c0_i32_0 = arith.constant 0 : i32
    return %c0_i32, %arg0 : i32, i32
  }
  func.func @transform_1(%arg0: i32) -> (i32, i32) {
    %c0_i32 = arith.constant 0 : i32
    %c0_i32_0 = arith.constant 0 : i32
    %c0_i32_1 = arith.constant 0 : i32
    return %c0_i32, %c0_i32_0 : i32, i32
  }
  func.func @transform_2(%arg0: i32) -> i32 {
    %c0_i32 = arith.constant 0 : i32
    %c0_i32_0 = arith.constant 0 : i32
    return %c0_i32 : i32
  }
  func.func @transform_3(%arg0: i32) -> (i32, i32) {
    %c0_i32 = arith.constant 0 : i32
    %c0_i32_0 = arith.constant 0 : i32
    return %c0_i32, %arg0 : i32, i32
  }
}

</mosaic_0001>

<llo_original>
// kernel: tpu_custom_call.1
$region0: #{tpu_custom_call.1}
  #allocation0 [shape = 'u32[]', space=smem, size = 0x4, offset = 0x4, fixed_abs, tag = 'smem constant byte address 0x4 - core index']
  #allocation1 [shape = 'u32[144,128]{1,0:T(1,128)}', space=vmem, size = 0x12000, scoped, tag = 'internal scratch']
  %s0 = inlined_call_operand.hbm [shape: f32[4,640], index: 0, kind: input, shape index: {}]
  %s1 = inlined_call_operand.hbm [shape: f32[4,3], index: 1, kind: input, shape index: {}]
  %s2 = inlined_call_operand.vmem [shape: f32[3], index: 2, kind: input, shape index: {}]
  %s3 = inlined_call_operand.hbm [shape: f32[3,640], index: 3, kind: output, shape index: {}]
  %s4 = sld [smem:[#allocation0]]
  $region34: #{tpu_custom_call.1} parent=0
    _
  %s6 = ssub.s32 1, %s4
  %s7 = scalar_select 0, %s6, %s4
  $region1: #{tpu_custom_call.1} parent=0
    #allocation2 [shape = 'u8[10240]{0}', space=vmem, size = 0x2800, scoped, tag = 'input window, operand 0, single buffered']
    #allocation3 [shape = 's32[1]{0}', space=sflag, size = 0x4, scoped, tag = 'scoped memory for tpu_custom_call.1']
    #allocation4 [shape = 's32[1]{0}', space=sflag, size = 0x4, scoped, tag = 'scoped memory for tpu_custom_call.1']
    #allocation5 [shape = 's32[1]{0}', space=sflag, size = 0x4, scoped, tag = 'scoped memory for tpu_custom_call.1']
    #allocation6 [shape = 's32[1]{0}', space=sflag, size = 0x4, scoped, tag = 'scoped memory for tpu_custom_call.1']
    #allocation7 [shape = 'u8[2048]{0}', space=smem, size = 0x800, scoped, tag = 'input window, operand 1, single buffered']
    #allocation8 [shape = 'u8[512]{0}', space=smem, size = 0x200, scoped, tag = 'input window, operand 2, single buffered']
    #allocation9 [shape = 'u8[10240]{0}', space=vmem, size = 0x2800, scoped, tag = 'output window, operand 0, single buffered']
    %8 = vsyncpa [#allocation3], 0
    %9 = vsyncpa [#allocation5], 0
    %10 = vsyncpa [#allocation6], 0
    %11 = vsyncpa [#allocation4], 0
    // Predicated region
    $region2: #{tpu_custom_call.1} parent=1 // pred_check
      _
    $region3: #{tpu_custom_call.1} parent=1 // pred_check_branch
      %13 = sbr.rel (0) target = $region5
    $region4: #{tpu_custom_call.1} parent=1 // pred_region
      %s15 = ssub.s32 320, 320
      %16 = vsyncadd [#allocation3], %s15
      %s18 = sshll.u32 [#allocation2], 4
      %s19 = int_to_ptr.vmem [resolvable:$true] %s18
      %21 = dma.hbm_to_vmem [thread:$0]  %s0, 320, %s19, [#allocation3]
    $region5: #{tpu_custom_call.1} parent=1 // pred_fallthru
      _
    // Predicated region
    $region6: #{tpu_custom_call.1} parent=1 // pred_check
      _
    $region7: #{tpu_custom_call.1} parent=1 // pred_check_branch
      %23 = sbr.rel (0) target = $region9
    $region8: #{tpu_custom_call.1} parent=1 // pred_region
      %s25 = ssub.s32 64, 64
      %26 = vsyncadd [#allocation5], %s25
      %29 = dma.hbm_to_smem %s1, 64, [#allocation7], [#allocation5]
    $region9: #{tpu_custom_call.1} parent=1 // pred_fallthru
      _
    // Predicated region
    $region10: #{tpu_custom_call.1} parent=1 // pred_check
      _
    $region11: #{tpu_custom_call.1} parent=1 // pred_check_branch
      %31 = sbr.rel (0) target = $region13
    $region12: #{tpu_custom_call.1} parent=1 // pred_region
      %s33 = ssub.s32 16, 16
      %34 = vsyncadd [#allocation6], %s33
      %s36 = sshll.u32 %s2, 4
      %s37 = int_to_ptr.vmem [resolvable:$true] %s36
      %39 = dma.vmem_to_smem %s37, 16, [#allocation8], [#allocation6]
    $region13: #{tpu_custom_call.1} parent=1 // pred_fallthru
      _
    // Predicated region
    $region14: #{tpu_custom_call.1} parent=1 // pred_check
      _
    $region15: #{tpu_custom_call.1} parent=1 // pred_check_branch
      %41 = sbr.rel (0) target = $region17
    $region16: #{tpu_custom_call.1} parent=1 // pred_region
      %42 = dma.done [#allocation3], 320
    $region17: #{tpu_custom_call.1} parent=1 // pred_fallthru
      _
    // Predicated region
    $region18: #{tpu_custom_call.1} parent=1 // pred_check
      _
    $region19: #{tpu_custom_call.1} parent=1 // pred_check_branch
      %44 = sbr.rel (0) target = $region21
    $region20: #{tpu_custom_call.1} parent=1 // pred_region
      %45 = dma.done [#allocation5], 64
    $region21: #{tpu_custom_call.1} parent=1 // pred_fallthru
      _
    // Predicated region
    $region22: #{tpu_custom_call.1} parent=1 // pred_check
      _
    $region23: #{tpu_custom_call.1} parent=1 // pred_check_branch
      %47 = sbr.rel (0) target = $region25
    $region24: #{tpu_custom_call.1} parent=1 // pred_region
      %48 = dma.done [#allocation6], 16
    $region25: #{tpu_custom_call.1} parent=1 // pred_fallthru
      _
    %49 = sfence
    %v50 = vld [vmem:[#allocation2] sm:$0xff]
    %v51 = vld [vmem:[#allocation2 + $0x8] sm:$0xff]
    %v52 = vld [vmem:[#allocation2 + $0x10] sm:$0xf]
    %s53 = sld [smem:[#allocation7]]
    %v54 = vstv %s53
    %v55 = vmul.f32 %v50, %v54
    %v56 = vmul.f32 %v51, %v54
    %v57 = vmul.f32 %v52, %v54
    %s58 = sld [smem:[#allocation7 + $0x80]]
    %v59 = vstv %s58
    %v60 = vmul.f32 %v50, %v59
    %v61 = vmul.f32 %v51, %v59
    %v62 = vmul.f32 %v52, %v59
    %v66 = vrot.slane %v60, 5
    %v67 = vrot.slane %v66, 4
    %v68 = vrot.slane %v61, 5
    %v69 = vrot.slane %v68, 4
    %v70 = vrot.slane %v62, 5
    %v71 = vrot.slane %v70, 4
    %v75 = vadd.f32 %v55, %v67
    %v76 = vadd.f32 %v56, %v69
    %v77 = vadd.f32 %v57, %v71
    %s78 = sld [smem:[#allocation7 + $0x100]]
    %v79 = vstv %s78
    %v80 = vmul.f32 %v50, %v79
    %v81 = vmul.f32 %v51, %v79
    %v82 = vmul.f32 %v52, %v79
    %v86 = vrot.slane %v80, 6
    %v87 = vrot.slane %v86, 4
    %v88 = vrot.slane %v81, 6
    %v89 = vrot.slane %v88, 4
    %v90 = vrot.slane %v82, 6
    %v91 = vrot.slane %v90, 4
    %v95 = vadd.f32 %v75, %v87
    %v96 = vadd.f32 %v76, %v89
    %v97 = vadd.f32 %v77, %v91
    %s98 = sld [smem:[#allocation7 + $0x180]]
    %v99 = vstv %s98
    %v100 = vmul.f32 %v50, %v99
    %v101 = vmul.f32 %v51, %v99
    %v102 = vmul.f32 %v52, %v99
    %v106 = vrot.slane %v100, 7
    %v107 = vrot.slane %v106, 4
    %v108 = vrot.slane %v101, 7
    %v109 = vrot.slane %v108, 4
    %v110 = vrot.slane %v102, 7
    %v111 = vrot.slane %v110, 4
    %v115 = vadd.f32 %v95, %v107
    %v116 = vadd.f32 %v96, %v109
    %v117 = vadd.f32 %v97, %v111
    %s118 = sld [smem:[#allocation8]]
    %v119 = vstv %s118
    %v120 = vadd.f32 %v115, %v119
    %v121 = vadd.f32 %v116, %v119
    %v122 = vadd.f32 %v117, %v119
    %s123 = sld [smem:[#allocation7 + $0x1]]
    %v124 = vstv %s123
    %v125 = vmul.f32 %v50, %v124
    %v126 = vmul.f32 %v51, %v124
    %v127 = vmul.f32 %v52, %v124
    %s128 = sld [smem:[#allocation7 + $0x81]]
    %v129 = vstv %s128
    %v130 = vmul.f32 %v50, %v129
    %v131 = vmul.f32 %v51, %v129
    %v132 = vmul.f32 %v52, %v129
    %v136 = vrot.slane %v130, 5
    %v137 = vrot.slane %v136, 4
    %v138 = vrot.slane %v131, 5
    %v139 = vrot.slane %v138, 4
    %v140 = vrot.slane %v132, 5
    %v141 = vrot.slane %v140, 4
    %v145 = vadd.f32 %v125, %v137
    %v146 = vadd.f32 %v126, %v139
    %v147 = vadd.f32 %v127, %v141
    %s148 = sld [smem:[#allocation7 + $0x101]]
    %v149 = vstv %s148
    %v150 = vmul.f32 %v50, %v149
    %v151 = vmul.f32 %v51, %v149
    %v152 = vmul.f32 %v52, %v149
    %v156 = vrot.slane %v150, 6
    %v157 = vrot.slane %v156, 4
    %v158 = vrot.slane %v151, 6
    %v159 = vrot.slane %v158, 4
    %v160 = vrot.slane %v152, 6
    %v161 = vrot.slane %v160, 4
    %v165 = vadd.f32 %v145, %v157
    %v166 = vadd.f32 %v146, %v159
    %v167 = vadd.f32 %v147, %v161
    %s168 = sld [smem:[#allocation7 + $0x181]]
    %v169 = vstv %s168
    %v170 = vmul.f32 %v50, %v169
    %v171 = vmul.f32 %v51, %v169
    %v172 = vmul.f32 %v52, %v169
    %v176 = vrot.slane %v170, 7
    %v177 = vrot.slane %v176, 4
    %v178 = vrot.slane %v171, 7
    %v179 = vrot.slane %v178, 4
    %v180 = vrot.slane %v172, 7
    %v181 = vrot.slane %v180, 4
    %v185 = vadd.f32 %v165, %v177
    %v186 = vadd.f32 %v166, %v179
    %v187 = vadd.f32 %v167, %v181
    %s188 = sld [smem:[#allocation8 + $0x1]]
    %v189 = vstv %s188
    %v190 = vadd.f32 %v185, %v189
    %v191 = vadd.f32 %v186, %v189
    %v192 = vadd.f32 %v187, %v189
    %s193 = sld [smem:[#allocation7 + $0x2]]
    %v194 = vstv %s193
    %v195 = vmul.f32 %v50, %v194
    %v196 = vmul.f32 %v51, %v194
    %v197 = vmul.f32 %v52, %v194
    %s198 = sld [smem:[#allocation7 + $0x82]]
    %v199 = vstv %s198
    %v200 = vmul.f32 %v50, %v199
    %v201 = vmul.f32 %v51, %v199
    %v202 = vmul.f32 %v52, %v199
    %v206 = vrot.slane %v200, 5
    %v207 = vrot.slane %v206, 4
    %v208 = vrot.slane %v201, 5
    %v209 = vrot.slane %v208, 4
    %v210 = vrot.slane %v202, 5
    %v211 = vrot.slane %v210, 4
    %v215 = vadd.f32 %v195, %v207
    %v216 = vadd.f32 %v196, %v209
    %v217 = vadd.f32 %v197, %v211
    %s218 = sld [smem:[#allocation7 + $0x102]]
    %v219 = vstv %s218
    %v220 = vmul.f32 %v50, %v219
    %v221 = vmul.f32 %v51, %v219
    %v222 = vmul.f32 %v52, %v219
    %v226 = vrot.slane %v220, 6
    %v227 = vrot.slane %v226, 4
    %v228 = vrot.slane %v221, 6
    %v229 = vrot.slane %v228, 4
    %v230 = vrot.slane %v222, 6
    %v231 = vrot.slane %v230, 4
    %v235 = vadd.f32 %v215, %v227
    %v236 = vadd.f32 %v216, %v229
    %v237 = vadd.f32 %v217, %v231
    %s238 = sld [smem:[#allocation7 + $0x182]]
    %v239 = vstv %s238
    %v240 = vmul.f32 %v50, %v239
    %v241 = vmul.f32 %v51, %v239
    %v242 = vmul.f32 %v52, %v239
    %v246 = vrot.slane %v240, 7
    %v247 = vrot.slane %v246, 4
    %v248 = vrot.slane %v241, 7
    %v249 = vrot.slane %v248, 4
    %v250 = vrot.slane %v242, 7
    %v251 = vrot.slane %v250, 4
    %v255 = vadd.f32 %v235, %v247
    %v256 = vadd.f32 %v236, %v249
    %v257 = vadd.f32 %v237, %v251
    %s258 = sld [smem:[#allocation8 + $0x2]]
    %v259 = vstv %s258
    %v260 = vadd.f32 %v255, %v259
    %v261 = vadd.f32 %v256, %v259
    %v262 = vadd.f32 %v257, %v259
    %v266 = vlaneseq
    %v267 = vshrl.u32 %v266, 7
    %v268 = vsub.s32 0, %v267
    %v269 = vrot.slane %v120, %v268
    %v270 = vlaneseq
    %v271 = vshrl.u32 %v270, 7
    %v272 = vsub.s32 4, %v271
    %v273 = vrot.slane %v120, %v272
    %v274 = vlaneseq
    %v275 = vshrl.u32 %v274, 7
    %v276 = vsub.s32 0, %v275
    %v277 = vrot.slane %v121, %v276
    %v278 = vlaneseq
    %v279 = vshrl.u32 %v278, 7
    %v280 = vsub.s32 4, %v279
    %v281 = vrot.slane %v121, %v280
    %v282 = vlaneseq
    %v283 = vshrl.u32 %v282, 7
    %v284 = vsub.s32 0, %v283
    %v285 = vrot.slane %v122, %v284
    %v294 = vlaneseq
    %v295 = vshrl.u32 %v294, 7
    %v296 = vsub.s32 0, %v295
    %v297 = vrot.slane %v190, %v296
    %v298 = vlaneseq
    %v299 = vshrl.u32 %v298, 7
    %v300 = vsub.s32 4, %v299
    %v301 = vrot.slane %v190, %v300
    %v302 = vlaneseq
    %v303 = vshrl.u32 %v302, 7
    %v304 = vsub.s32 0, %v303
    %v305 = vrot.slane %v191, %v304
    %v306 = vlaneseq
    %v307 = vshrl.u32 %v306, 7
    %v308 = vsub.s32 4, %v307
    %v309 = vrot.slane %v191, %v308
    %v310 = vlaneseq
    %v311 = vshrl.u32 %v310, 7
    %v312 = vsub.s32 0, %v311
    %v313 = vrot.slane %v192, %v312
    %v322 = vlaneseq
    %v323 = vshrl.u32 %v322, 7
    %v324 = vsub.s32 0, %v323
    %v325 = vrot.slane %v260, %v324
    %v326 = vlaneseq
    %v327 = vshrl.u32 %v326, 7
    %v328 = vsub.s32 4, %v327
    %v329 = vrot.slane %v260, %v328
    %v330 = vlaneseq
    %v331 = vshrl.u32 %v330, 7
    %v332 = vsub.s32 0, %v331
    %v333 = vrot.slane %v261, %v332
    %v334 = vlaneseq
    %v335 = vshrl.u32 %v334, 7
    %v336 = vsub.s32 4, %v335
    %v337 = vrot.slane %v261, %v336
    %v338 = vlaneseq
    %v339 = vshrl.u32 %v338, 7
    %v340 = vsub.s32 0, %v339
    %v341 = vrot.slane %v262, %v340
    %vm347 = vcmask 1040384
    %v348 = vsel %vm347, %v269, %v297
    %v349 = vsel %vm347, %v273, %v301
    %v350 = vsel %vm347, %v277, %v305
    %v351 = vsel %vm347, %v281, %v309
    %v352 = vsel %vm347, %v285, %v313
    %vm353 = vcmask 1041408
    %v354 = vsel %vm353, %v348, %v325
    %v355 = vsel %vm353, %v349, %v329
    %v356 = vsel %vm353, %v350, %v333
    %v357 = vsel %vm353, %v351, %v337
    %v358 = vsel %vm353, %v352, %v341
    %v363 = vcombine.low %v354, %v355
    %v364 = vcombine.low %v356, %v357
    %367 = vst [vmem:[#allocation9] sm:$0x77] %v363
    %368 = vst [vmem:[#allocation9 + $0x8] sm:$0x77] %v364
    %369 = vst [vmem:[#allocation9 + $0x10] sm:$0x7] %v358
    // Predicated region
    $region26: #{tpu_custom_call.1} parent=1 // pred_check
      _
    $region27: #{tpu_custom_call.1} parent=1 // pred_check_branch
      %371 = sbr.rel (0) target = $region29
    $region28: #{tpu_custom_call.1} parent=1 // pred_region
      %s373 = ssub.s32 320, 320
      %374 = vsyncadd [#allocation4], %s373
      %s376 = sshll.u32 [#allocation9], 4
      %s377 = int_to_ptr.vmem [resolvable:$true] %s376
      %379 = dma.vmem_to_hbm [thread:$0]  %s377, 320, %s3, [#allocation4]
    $region29: #{tpu_custom_call.1} parent=1 // pred_fallthru
      _
    // Predicated region
    $region30: #{tpu_custom_call.1} parent=1 // pred_check
      _
    $region31: #{tpu_custom_call.1} parent=1 // pred_check_branch
      %381 = sbr.rel (0) target = $region33
    $region32: #{tpu_custom_call.1} parent=1 // pred_region
      %382 = dma.done [#allocation4], 320
    $region33: #{tpu_custom_call.1} parent=1 // pred_fallthru
      _
    %383 = vsyncpa [#allocation3], 1
    %384 = vsyncpa [#allocation4], 1
    %385 = vsyncpa [#allocation5], 1
    %386 = vsyncpa [#allocation6], 1

</llo_original>
